<compile_context>
chip_gen: v7x
topology: tpu7x:2x2x1
jax: 0.10.0
libtpu: 0.0.40
codegen_flags: <defaults>
</compile_context>

<pallas_src>
import jax
import jax.numpy as jnp
from jax.experimental import pallas as pl
from jax.experimental.pallas import tpu as pltpu


def _linear_kernel(x_ref, w_ref, b_ref, o_ref):
    # x_ref: (TB, F) native dtype | w_ref: (1, F) f32 | b_ref: (1, 1) f32 SMEM
    # o_ref: (TB, 1) f32
    x = x_ref[...].astype(jnp.float32)
    w = w_ref[...]                                       # (1, F) broadcasts over rows
    acc = jnp.sum(x * w, axis=-1, keepdims=True)         # VPU mul + XLU lane reduce
    o_ref[...] = (acc + b_ref[0, 0]).astype(o_ref.dtype)


def _round_up(n: int, m: int) -> int:
    return ((n + m - 1) // m) * m


def linear_model_forward(x, weight, bias, dropout_rate: float = 0.0,
                         block_rows: int = 8192):
    """Forward pass of LinearModel.

    x:      (B, F) activations (kept in native dtype; f32 accumulate in-kernel)
    weight: (1, F) float32  (PyTorch nn.Linear layout; used row-major, no .T)
    bias:   (1,)   float32
    returns squeezed linear output (matches torch's .squeeze()).
    """
    if dropout_rate != 0.0:
        # TODO(synk): stochastic dropout (functional F.dropout defaults to
        # training=True) would need in-kernel pltpu.prng_seed/prng_random_bits;
        # the module default dropout_rate=0 makes it the identity.
        raise NotImplementedError("dropout_rate > 0 not supported")

    B, F = x.shape

    # Row tile: multiple of 8 (sublane constraint), large enough to amortize
    # the ~0.35us per-grid-step overhead on realistic batch sizes.
    tb = min(block_rows, _round_up(B, 8))
    tb = _round_up(tb, 8)
    padded_b = _round_up(B, tb)
    if padded_b != B:
        x = jnp.pad(x, ((0, padded_b - B), (0, 0)))

    w_row = weight.astype(jnp.float32)              # (1, F)
    b_smem = bias.reshape(1, 1).astype(jnp.float32)  # scalar in SMEM

    # VMEM budget: lane-padded, double-buffered tiles + headroom.  Keeps the
    # 2-deep pipeline on v5e's 16 MiB default and stays well under v7x's 64 MiB.
    lane = 128
    padded_f = _round_up(F, lane)
    in_tile = tb * padded_f * x.dtype.itemsize
    out_tile = tb * lane * 4
    vmem_need = 2 * (in_tile + out_tile) + 2 * padded_f * 4 + (2 << 20)
    vmem_limit = int(min(max(vmem_need, 16 << 20), 48 << 20))

    grid = (padded_b // tb,)
    out = pl.pallas_call(
        _linear_kernel,
        out_shape=jax.ShapeDtypeStruct((padded_b, 1), jnp.float32),
        grid=grid,
        in_specs=[
            pl.BlockSpec((tb, F), lambda i: (i, 0)),
            pl.BlockSpec((1, F), lambda i: (0, 0)),             # grid-invariant weight
            pl.BlockSpec(memory_space=pltpu.MemorySpace.SMEM),  # scalar bias
        ],
        out_specs=pl.BlockSpec((tb, 1), lambda i: (i, 0)),
        compiler_params=pltpu.CompilerParams(
            dimension_semantics=("parallel",),
            vmem_limit_bytes=vmem_limit,
        ),
    )(x, w_row, b_smem)

    return jnp.squeeze(out[:B])   # matches torch .squeeze()


def init_linear_params(key, input_dim: int, radius: int):
    """Deterministic init matching nn.Linear's shapes (uniform +/- 1/sqrt(fan_in))."""
    in_features = (2 * radius + 1) ** 2 * input_dim
    k_w, k_b = jax.random.split(key)
    bound = 1.0 / jnp.sqrt(jnp.float32(in_features))
    weight = jax.random.uniform(k_w, (1, in_features), jnp.float32, -bound, bound)
    bias = jax.random.uniform(k_b, (1,), jnp.float32, -bound, bound)
    return weight, bias


if __name__ == "__main__":
    key = jax.random.PRNGKey(0)
    k_x, k_p = jax.random.split(key)

    input_dim = 4
    radius = 1
    batch = 8
    in_features = (2 * radius + 1) ** 2 * input_dim  # 36

    x = jax.random.normal(k_x, (batch, in_features), dtype=jnp.float32)
    weight, bias = init_linear_params(k_p, input_dim, radius)

    y = linear_model_forward(x, weight, bias, dropout_rate=0.0)
    y = jax.block_until_ready(y)

    # reference check in plain JAX
    y_ref = jnp.squeeze(x @ weight.T + bias)
    assert y.shape == (batch,)
    assert jnp.allclose(y, y_ref, atol=1e-5, rtol=1e-5)

    print("KERNEL_OK")
</pallas_src>

<mosaic_0001>
module attributes {stable_mosaic.version = 11 : i64} {
  func.func @_linear_kernel(%arg0: i32, %arg1: memref<8x36xf32, #tpu.memory_space<vmem>>, %arg2: memref<1x36xf32, #tpu.memory_space<vmem>>, %arg3: memref<1x1xf32, #tpu.memory_space<smem>>, %arg4: memref<8x1xf32, #tpu.memory_space<vmem>>) attributes {dimension_semantics = [#tpu.dimension_semantics<parallel>], iteration_bounds = array<i64: 1>, scalar_prefetch = 0 : i64, scratch_operands = 0 : i64, tpu.core_type = #tpu.core_type<tc>, window_params = [{transform_indices = @transform_0, window_bounds = array<i64: 8, 36>}, {pipeline_mode = #tpu.pipeline_mode<synchronous>, transform_indices = @transform_1, window_bounds = array<i64: 1, 36>}, {transform_indices = @transform_2, window_bounds = array<i64: 1, 1>}, {transform_indices = @transform_3, window_bounds = array<i64: 8, 1>}]} {
    %c0 = arith.constant 0 : index
    %c0_0 = arith.constant 0 : index
    %0 = vector.load %arg1[%c0, %c0_0] : memref<8x36xf32, #tpu.memory_space<vmem>>, vector<8x36xf32>
    %c0_1 = arith.constant 0 : index
    %c0_2 = arith.constant 0 : index
    %1 = vector.load %arg2[%c0_1, %c0_2] : memref<1x36xf32, #tpu.memory_space<vmem>>, vector<1x36xf32>
    %2 = vector.broadcast %1 : vector<1x36xf32> to vector<8x36xf32>
    %3 = arith.mulf %0, %2 : vector<8x36xf32>
    %cst = arith.constant dense<0.000000e+00> : vector<8xf32>
    %4 = vector.multi_reduction <add>, %3, %cst [1] : vector<8x36xf32> to vector<8xf32>
    %5 = vector.shape_cast %4 : vector<8xf32> to vector<8x1xf32>
    %c0_3 = arith.constant 0 : index
    %c0_4 = arith.constant 0 : index
    %6 = memref.load %arg3[%c0_3, %c0_4] : memref<1x1xf32, #tpu.memory_space<smem>>
    %7 = vector.broadcast %6 : f32 to vector<8x1xf32>
    %8 = arith.addf %5, %7 : vector<8x1xf32>
    %c0_5 = arith.constant 0 : index
    %c0_6 = arith.constant 0 : index
    %9 = vector.load %arg4[%c0_5, %c0_6] : memref<8x1xf32, #tpu.memory_space<vmem>>, vector<8x1xf32>
    tpu.vector_store %arg4[%c0_5, %c0_6], %8 {strides = array<i32>} : memref<8x1xf32, #tpu.memory_space<vmem>>, vector<8x1xf32>,
    return
  }
  func.func @transform_0(%arg0: i32) -> (i32, i32) {
    %c0_i32 = arith.constant 0 : i32
    %c0_i32_0 = arith.constant 0 : i32
    return %arg0, %c0_i32 : i32, i32
  }
  func.func @transform_1(%arg0: i32) -> (i32, i32) {
    %c0_i32 = arith.constant 0 : i32
    %c0_i32_0 = arith.constant 0 : i32
    %c0_i32_1 = arith.constant 0 : i32
    return %c0_i32, %c0_i32_0 : i32, i32
  }
  func.func @transform_2(%arg0: i32) -> (i32, i32) {
    %c0_i32 = arith.constant 0 : i32
    %c0_i32_0 = arith.constant 0 : i32
    %c0_i32_1 = arith.constant 0 : i32
    return %c0_i32, %c0_i32_0 : i32, i32
  }
  func.func @transform_3(%arg0: i32) -> (i32, i32) {
    %c0_i32 = arith.constant 0 : i32
    %c0_i32_0 = arith.constant 0 : i32
    return %arg0, %c0_i32 : i32, i32
  }
}

</mosaic_0001>

<llo_original>
// kernel: tpu_custom_call.1
$region0: #{tpu_custom_call.1}
  #allocation0 [shape = 'u32[]', space=smem, size = 0x4, offset = 0x4, fixed_abs, tag = 'smem constant byte address 0x4 - core index']
  #allocation1 [shape = 'u32[144,128]{1,0:T(1,128)}', space=vmem, size = 0x12000, scoped, tag = 'internal scratch']
  #allocation2 [shape = 'f32[1,1]{1,0:T(1,128)S(6)}', space=smem, size = 0x200, scoped, tag = 'scoped memory for tpu_custom_call.1']
  %s0 = inlined_call_operand.hbm [shape: f32[8,36], index: 0, kind: input, shape index: {}]
  %s1 = inlined_call_operand.vmem [shape: f32[1,36], index: 1, kind: input, shape index: {}]
  %s2 = inlined_call_operand.<no memory space> [shape: f32[1,1], index: 2, kind: input, shape index: {}]
  %s3 = inlined_call_operand.vmem [shape: f32[8,1], index: 3, kind: output, shape index: {}]
  %s4 = sld [smem:[#allocation0]]
  $region26: #{tpu_custom_call.1} parent=0
    _
  %s6 = ssub.s32 1, %s4
  %s7 = scalar_select 0, %s6, %s4
  %8 = sst [smem:[#allocation2]] %s2
  $region1: #{tpu_custom_call.1} parent=0
    #allocation3 [shape = 'u8[4096]{0}', space=vmem, size = 0x1000, scoped, tag = 'input window, operand 0, single buffered']
    #allocation4 [shape = 's32[1]{0}', space=sflag, size = 0x4, scoped, tag = 'scoped memory for tpu_custom_call.1']
    %9 = vsyncpa [#allocation4], 0
    // Predicated region
    $region2: #{tpu_custom_call.1} parent=1 // pred_check
      _
    $region3: #{tpu_custom_call.1} parent=1 // pred_check_branch
      %11 = sbr.rel (0) target = $region5
    $region4: #{tpu_custom_call.1} parent=1 // pred_region
      %s13 = ssub.s32 128, 128
      %14 = vsyncadd [#allocation4], %s13
      %s16 = sshll.u32 [#allocation3], 4
      %s17 = int_to_ptr.vmem [resolvable:$true] %s16
      %19 = dma.hbm_to_vmem [thread:$0]  %s0, 128, %s17, [#allocation4]
    $region5: #{tpu_custom_call.1} parent=1 // pred_fallthru
      _
    // Predicated region
    $region6: #{tpu_custom_call.1} parent=1 // pred_check
      _
    $region7: #{tpu_custom_call.1} parent=1 // pred_check_branch
      %21 = sbr.rel (0) target = $region9
    $region8: #{tpu_custom_call.1} parent=1 // pred_region
      _
    $region9: #{tpu_custom_call.1} parent=1 // pred_fallthru
      _
    // Predicated region
    $region10: #{tpu_custom_call.1} parent=1 // pred_check
      _
    $region11: #{tpu_custom_call.1} parent=1 // pred_check_branch
      %23 = sbr.rel (0) target = $region13
    $region12: #{tpu_custom_call.1} parent=1 // pred_region
      _
    $region13: #{tpu_custom_call.1} parent=1 // pred_fallthru
      _
    // Predicated region
    $region14: #{tpu_custom_call.1} parent=1 // pred_check
      _
    $region15: #{tpu_custom_call.1} parent=1 // pred_check_branch
      %25 = sbr.rel (0) target = $region17
    $region16: #{tpu_custom_call.1} parent=1 // pred_region
      %26 = dma.done [#allocation4], 128
    $region17: #{tpu_custom_call.1} parent=1 // pred_fallthru
      _
    %v27 = vld [vmem:[#allocation3] sm:$0xff]
    %v28 = vld [vmem:[%s1] sm:$0x1]
    %v30 = vlaneseq
    %v31 = vshrl.u32 %v30, 7
    %v32 = vsub.s32 0, %v31
    %v33 = vrot.slane %v28, %v32
    %v35 = vmul.f32 %v27, %v33
    %vm36 = vcmask 293888
    %v37 = vsel %vm36, %v35, 0.0
    %38 = vadd.xlane.f32.xlu0 %v37
    %v39 = vpop.xlane.xlu0 %38
    %s40 = sld [smem:[#allocation2]]
    %v41 = vstv %s40
    %v42 = vadd.f32 %v39, %v41
    %vm43 = vcmask 7168
    %44 = vst.msk [vmem:[%s3] sm:$0xff] %vm43, %v42
    // Predicated region
    $region18: #{tpu_custom_call.1} parent=1 // pred_check
      _
    $region19: #{tpu_custom_call.1} parent=1 // pred_check_branch
      %46 = sbr.rel (0) target = $region21
    $region20: #{tpu_custom_call.1} parent=1 // pred_region
      _
    $region21: #{tpu_custom_call.1} parent=1 // pred_fallthru
      _
    // Predicated region
    $region22: #{tpu_custom_call.1} parent=1 // pred_check
      _
    $region23: #{tpu_custom_call.1} parent=1 // pred_check_branch
      %48 = sbr.rel (0) target = $region25
    $region24: #{tpu_custom_call.1} parent=1 // pred_region
      _
    $region25: #{tpu_custom_call.1} parent=1 // pred_fallthru
      _
    %49 = vsyncpa [#allocation4], 1

</llo_original>
